<compile_context>
chip_gen: v7x
topology: tpu7x:2x2x1
jax: 0.10.0
libtpu: 0.0.40
codegen_flags: <defaults>
</compile_context>

<pallas_src>
import math

import jax
import jax.numpy as jnp
from jax.experimental import pallas as pl
from jax.experimental.pallas import tpu as pltpu

LOG_2PI = math.log(2.0 * math.pi)


def _kd_dot(p, x):
    """p: (K, D), x: (TB, D) -> (K, TB), contracted over D (runs on the MXU)."""
    return jax.lax.dot_general(
        p, x, (((1,), (1,)), ((), ())), preferred_element_type=jnp.float32
    )


def prior_logprob_kernel(a_ref, b_ref, bias_ref, z_ref, out_ref):
    """One grid step: a (TB, D) tile of z -> a lane-dense (1, TB) row of log p(z).

    a_ref    : (K, D)  = -0.5 * exp(-log_var)                     (resident)
    b_ref    : (K, D)  =  mu * exp(-log_var)                      (resident)
    bias_ref : (K, 1)  =  log_pi - 0.5*(sum_d[mu^2/var + log_var] + D*log(2pi))
    z_ref    : (TB, D) tile of z                                  (streamed)
    out_ref  : (1, TB) tile of the output                         (lane-dense)
    """
    z = z_ref[...].astype(jnp.float32)          # (TB, D)
    a = a_ref[...]                              # (K, D)
    bm = b_ref[...]                             # (K, D)
    bias = bias_ref[...]                        # (K, 1)

    # log N(z | mu_k, var_k) + log pi_k, laid out (K, TB) so batch is on lanes:
    #   -0.5 * z^2 @ inv_var^T  +  z @ (mu*inv_var)^T  +  bias_k
    # Kept f32: the op is HBM-bound, so a bf16 MXU path would not help and
    # would cost accuracy.
    s = _kd_dot(a, z * z)                       # (K, TB)
    s = s + _kd_dot(bm, z)                      # (K, TB)
    s = s + bias                                # broadcast (K, 1) over lanes

    # logsumexp over the K components (sublane axis) -> (1, TB)
    m = jnp.max(s, axis=0, keepdims=True)
    lse = m + jnp.log(jnp.sum(jnp.exp(s - m), axis=0, keepdims=True))
    out_ref[...] = lse


def _choose_tb(B, D):
    """Batch-tile size.

    Mem-bound kernel: target a ~2 MiB z tile per grid step (double-buffered ->
    ~4 MiB of streamed VMEM, comfortably inside the default scoped limit and
    v7x's 64 MiB physical VMEM) so DMA time dominates the ~0.35 us per-step
    overhead; keep it a multiple of 128 so output rows are lane-dense.
    """
    budget_bytes = 2 * 1024 * 1024              # per z tile; x2 for double-buffer
    tb = max(128, min(16384, budget_bytes // (4 * max(D, 1))))
    tb = (tb // 128) * 128                      # lane-dense output rows
    if B <= tb:
        return B                                # single full block (block == array)
    return tb


def prior_log_prob(z, pi_logits, mu, log_var, tb=None):
    """Pallas equivalent of Prior.forward: returns log p(z) with shape (B,)."""
    B, D = z.shape
    K = mu.shape[0]

    z = z.astype(jnp.float32)
    mu32 = mu.astype(jnp.float32)
    lv32 = log_var.astype(jnp.float32)

    # Parameter-only terms: computed ONCE here (tiny (K, D) arrays) instead of
    # per grid step in-kernel.  Done in the wrapper rather than via
    # @pl.when(program_id==0) scratch so the batch grid axis can be safely
    # marked "parallel" (megacore sharding on v7x would otherwise skip step 0
    # on the second core and leave scratch uninitialized).
    inv_var = jnp.exp(-lv32)                                     # (K, D)
    a = -0.5 * inv_var                                           # (K, D)
    bm = mu32 * inv_var                                          # (K, D)
    pi = jax.nn.softmax(pi_logits.astype(jnp.float32), axis=0)   # (K,)
    log_pi = jnp.log(pi + 1e-8)                                  # (K,)
    const_k = jnp.sum(mu32 * mu32 * inv_var + lv32, axis=1)      # (K,)
    bias = (log_pi - 0.5 * (const_k + D * LOG_2PI)).reshape(K, 1)

    TB = _choose_tb(B, D) if tb is None else tb
    grid = (pl.cdiv(B, TB),)

    out = pl.pallas_call(
        prior_logprob_kernel,
        out_shape=jax.ShapeDtypeStruct((1, B), jnp.float32),
        grid=grid,
        in_specs=[
            pl.BlockSpec((K, D), lambda i: (0, 0)),   # a      (resident)
            pl.BlockSpec((K, D), lambda i: (0, 0)),   # bm     (resident)
            pl.BlockSpec((K, 1), lambda i: (0, 0)),   # bias   (resident)
            pl.BlockSpec((TB, D), lambda i: (i, 0)),  # z      (streamed over B)
        ],
        out_specs=pl.BlockSpec((1, TB), lambda i: (0, i)),       # lane-dense row
        compiler_params=pltpu.CompilerParams(
            dimension_semantics=("parallel",),
        ),
    )(a, bm, bias, z)
    return out[0]


def prior_log_prob_ref(z, pi_logits, mu, log_var):
    """Pure-JAX reference matching the PyTorch forward literally."""
    zb = z[:, None, :]
    pi = jax.nn.softmax(pi_logits, axis=0)
    mub = mu[None, :, :]
    lvb = log_var[None, :, :]
    var = jnp.exp(lvb)
    lp = -0.5 * (lvb + (zb - mub) ** 2 / var + LOG_2PI)
    lp = jnp.sum(lp, axis=2)
    lp = lp + jnp.log(pi + 1e-8)[None, :]
    return jax.scipy.special.logsumexp(lp, axis=1)


# TODO(synk): Prior.sample (torch.multinomial-based ancestral sampling) is not part
# of forward() and is not implemented as a Pallas kernel.

if __name__ == "__main__":
    B, Z_DIM, K = 8, 32, 10

    key = jax.random.PRNGKey(0)
    k_pi, k_mu, k_lv, k_z = jax.random.split(key, 4)

    # deterministic "randn" parameter init (matches nn.Parameter(torch.randn(...)) shapes)
    pi_logits = jax.random.normal(k_pi, (K,), dtype=jnp.float32)
    mu = jax.random.normal(k_mu, (K, Z_DIM), dtype=jnp.float32)
    log_var = jax.random.normal(k_lv, (K, Z_DIM), dtype=jnp.float32)
    z = jax.random.normal(k_z, (B, Z_DIM), dtype=jnp.float32)

    # demo-sized call (single full block)
    log_p_z = prior_log_prob(z, pi_logits, mu, log_var)
    log_p_z = jax.block_until_ready(log_p_z)
    ref = prior_log_prob_ref(z, pi_logits, mu, log_var)
    assert log_p_z.shape == (B,)
    assert jnp.allclose(log_p_z, ref, rtol=1e-4, atol=1e-4), (log_p_z, ref)

    # larger batch exercising the streamed grid path (multi-step + partial tile)
    B2 = 300
    z2 = jax.random.normal(jax.random.PRNGKey(1), (B2, Z_DIM), dtype=jnp.float32)
    out2 = jax.block_until_ready(prior_log_prob(z2, pi_logits, mu, log_var, tb=128))
    ref2 = prior_log_prob_ref(z2, pi_logits, mu, log_var)
    assert out2.shape == (B2,)
    assert jnp.allclose(out2, ref2, rtol=1e-4, atol=1e-4), (out2, ref2)

    print("KERNEL_OK")
</pallas_src>

<mosaic_0001>
module attributes {stable_mosaic.version = 11 : i64} {
  func.func @prior_logprob_kernel(%arg0: i32, %arg1: memref<10x32xf32, #tpu.memory_space<vmem>>, %arg2: memref<10x32xf32, #tpu.memory_space<vmem>>, %arg3: memref<10x1xf32, #tpu.memory_space<vmem>>, %arg4: memref<8x32xf32, #tpu.memory_space<vmem>>, %arg5: memref<1x8xf32, #tpu.memory_space<vmem>>) attributes {dimension_semantics = [#tpu.dimension_semantics<parallel>], iteration_bounds = array<i64: 1>, scalar_prefetch = 0 : i64, scratch_operands = 0 : i64, tpu.core_type = #tpu.core_type<tc>, window_params = [{pipeline_mode = #tpu.pipeline_mode<synchronous>, transform_indices = @transform_0, window_bounds = array<i64: 10, 32>}, {pipeline_mode = #tpu.pipeline_mode<synchronous>, transform_indices = @transform_1, window_bounds = array<i64: 10, 32>}, {pipeline_mode = #tpu.pipeline_mode<synchronous>, transform_indices = @transform_2, window_bounds = array<i64: 10, 1>}, {transform_indices = @transform_3, window_bounds = array<i64: 8, 32>}, {transform_indices = @transform_4, window_bounds = array<i64: 1, 8>}]} {
    %c0 = arith.constant 0 : index
    %c0_0 = arith.constant 0 : index
    %0 = vector.load %arg4[%c0, %c0_0] : memref<8x32xf32, #tpu.memory_space<vmem>>, vector<8x32xf32>
    %c0_1 = arith.constant 0 : index
    %c0_2 = arith.constant 0 : index
    %1 = vector.load %arg1[%c0_1, %c0_2] : memref<10x32xf32, #tpu.memory_space<vmem>>, vector<10x32xf32>
    %c0_3 = arith.constant 0 : index
    %c0_4 = arith.constant 0 : index
    %2 = vector.load %arg2[%c0_3, %c0_4] : memref<10x32xf32, #tpu.memory_space<vmem>>, vector<10x32xf32>
    %c0_5 = arith.constant 0 : index
    %c0_6 = arith.constant 0 : index
    %3 = vector.load %arg3[%c0_5, %c0_6] : memref<10x1xf32, #tpu.memory_space<vmem>>, vector<10x1xf32>
    %4 = arith.mulf %0, %0 : vector<8x32xf32>
    %cst = arith.constant dense<0.000000e+00> : vector<10x8xf32>
    %5 = tpu.matmul %1, %4, %cst {dimension_numbers = #tpu.dot_dimension_numbers<[1], [1], [0], [0], [0, 0, 1, 0], [], []>} : vector<10x32xf32>, vector<8x32xf32>, vector<10x8xf32> -> vector<10x8xf32>
    %cst_7 = arith.constant dense<0.000000e+00> : vector<10x8xf32>
    %6 = tpu.matmul %2, %0, %cst_7 {dimension_numbers = #tpu.dot_dimension_numbers<[1], [1], [0], [0], [0, 0, 1, 0], [], []>} : vector<10x32xf32>, vector<8x32xf32>, vector<10x8xf32> -> vector<10x8xf32>
    %7 = arith.addf %5, %6 : vector<10x8xf32>
    %8 = vector.broadcast %3 : vector<10x1xf32> to vector<10x8xf32>
    %9 = arith.addf %7, %8 : vector<10x8xf32>
    %cst_8 = arith.constant dense<0xFF800000> : vector<8xf32>
    %10 = vector.multi_reduction <maximumf>, %9, %cst_8 [0] : vector<10x8xf32> to vector<8xf32>
    %11 = vector.shape_cast %10 : vector<8xf32> to vector<1x8xf32>
    %12 = vector.broadcast %11 : vector<1x8xf32> to vector<10x8xf32>
    %13 = arith.subf %9, %12 : vector<10x8xf32>
    %14 = math.exp %13 : vector<10x8xf32>
    %cst_9 = arith.constant dense<0.000000e+00> : vector<8xf32>
    %15 = vector.multi_reduction <add>, %14, %cst_9 [0] : vector<10x8xf32> to vector<8xf32>
    %16 = vector.shape_cast %15 : vector<8xf32> to vector<1x8xf32>
    %17 = math.log %16 : vector<1x8xf32>
    %18 = arith.addf %11, %17 : vector<1x8xf32>
    %c0_10 = arith.constant 0 : index
    %c0_11 = arith.constant 0 : index
    %19 = vector.load %arg5[%c0_10, %c0_11] : memref<1x8xf32, #tpu.memory_space<vmem>>, vector<1x8xf32>
    tpu.vector_store %arg5[%c0_10, %c0_11], %18 {strides = array<i32>} : memref<1x8xf32, #tpu.memory_space<vmem>>, vector<1x8xf32>,
    return
  }
  func.func @transform_0(%arg0: i32) -> (i32, i32) {
    %c0_i32 = arith.constant 0 : i32
    %c0_i32_0 = arith.constant 0 : i32
    %c0_i32_1 = arith.constant 0 : i32
    return %c0_i32, %c0_i32_0 : i32, i32
  }
  func.func @transform_1(%arg0: i32) -> (i32, i32) {
    %c0_i32 = arith.constant 0 : i32
    %c0_i32_0 = arith.constant 0 : i32
    %c0_i32_1 = arith.constant 0 : i32
    return %c0_i32, %c0_i32_0 : i32, i32
  }
  func.func @transform_2(%arg0: i32) -> (i32, i32) {
    %c0_i32 = arith.constant 0 : i32
    %c0_i32_0 = arith.constant 0 : i32
    %c0_i32_1 = arith.constant 0 : i32
    return %c0_i32, %c0_i32_0 : i32, i32
  }
  func.func @transform_3(%arg0: i32) -> (i32, i32) {
    %c0_i32 = arith.constant 0 : i32
    %c0_i32_0 = arith.constant 0 : i32
    return %arg0, %c0_i32 : i32, i32
  }
  func.func @transform_4(%arg0: i32) -> (i32, i32) {
    %c0_i32 = arith.constant 0 : i32
    %c0_i32_0 = arith.constant 0 : i32
    return %c0_i32, %arg0 : i32, i32
  }
}

</mosaic_0001>

<llo_original>
// kernel: tpu_custom_call.1
$region0: #{tpu_custom_call.1}
  #allocation0 [shape = 'u32[]', space=smem, size = 0x4, offset = 0x4, fixed_abs, tag = 'smem constant byte address 0x4 - core index']
  #allocation1 [shape = 'u32[144,128]{1,0:T(1,128)}', space=vmem, size = 0x12000, scoped, tag = 'internal scratch']
  %s0 = inlined_call_operand.vmem [shape: f32[10,32], index: 0, kind: input, shape index: {}]
  %s1 = inlined_call_operand.hbm [shape: f32[10,32], index: 1, kind: input, shape index: {}]
  %s2 = inlined_call_operand.vmem [shape: f32[10,1], index: 2, kind: input, shape index: {}]
  %s3 = inlined_call_operand.vmem [shape: f32[8,32], index: 3, kind: input, shape index: {}]
  %s4 = inlined_call_operand.hbm [shape: f32[1,8], index: 4, kind: output, shape index: {}]
  %s5 = sld [smem:[#allocation0]]
  $region30: #{tpu_custom_call.1} parent=0
    _
  %s7 = ssub.s32 1, %s5
  %s8 = scalar_select 0, %s7, %s5
  $region1: #{tpu_custom_call.1} parent=0
    #allocation2 [shape = 'u8[8192]{0}', space=vmem, size = 0x2000, scoped, tag = 'input window, operand 1, single buffered']
    #allocation3 [shape = 's32[1]{0}', space=sflag, size = 0x4, scoped, tag = 'scoped memory for tpu_custom_call.1']
    #allocation4 [shape = 's32[1]{0}', space=sflag, size = 0x4, scoped, tag = 'scoped memory for tpu_custom_call.1']
    #allocation5 [shape = 'u8[512]{0}', space=vmem, size = 0x400, scoped, tag = 'output window, operand 0, single buffered']
    %9 = vsyncpa [#allocation3], 0
    %10 = vsyncpa [#allocation4], 0
    // Predicated region
    $region2: #{tpu_custom_call.1} parent=1 // pred_check
      _
    $region3: #{tpu_custom_call.1} parent=1 // pred_check_branch
      %12 = sbr.rel (0) target = $region5
    $region4: #{tpu_custom_call.1} parent=1 // pred_region
      _
    $region5: #{tpu_custom_call.1} parent=1 // pred_fallthru
      _
    // Predicated region
    $region6: #{tpu_custom_call.1} parent=1 // pred_check
      _
    $region7: #{tpu_custom_call.1} parent=1 // pred_check_branch
      %14 = sbr.rel (0) target = $region9
    $region8: #{tpu_custom_call.1} parent=1 // pred_region
      %s16 = ssub.s32 256, 256
      %17 = vsyncadd [#allocation3], %s16
      %s18 = sshll.u32 [#allocation2], 4
      %s19 = int_to_ptr.vmem [resolvable:$true] %s18
      %24 = dma.hbm_to_vmem [thread:$0]  %s1, 256, %s19, [#allocation3], 128, 128, 8
    $region9: #{tpu_custom_call.1} parent=1 // pred_fallthru
      _
    // Predicated region
    $region10: #{tpu_custom_call.1} parent=1 // pred_check
      _
    $region11: #{tpu_custom_call.1} parent=1 // pred_check_branch
      %26 = sbr.rel (0) target = $region13
    $region12: #{tpu_custom_call.1} parent=1 // pred_region
      _
    $region13: #{tpu_custom_call.1} parent=1 // pred_fallthru
      _
    // Predicated region
    $region14: #{tpu_custom_call.1} parent=1 // pred_check
      _
    $region15: #{tpu_custom_call.1} parent=1 // pred_check_branch
      %28 = sbr.rel (0) target = $region17
    $region16: #{tpu_custom_call.1} parent=1 // pred_region
      _
    $region17: #{tpu_custom_call.1} parent=1 // pred_fallthru
      _
    // Predicated region
    $region18: #{tpu_custom_call.1} parent=1 // pred_check
      _
    $region19: #{tpu_custom_call.1} parent=1 // pred_check_branch
      %30 = sbr.rel (0) target = $region21
    $region20: #{tpu_custom_call.1} parent=1 // pred_region
      %31 = dma.done [#allocation3], 256
    $region21: #{tpu_custom_call.1} parent=1 // pred_fallthru
      _
    %v32 = vld [vmem:[%s3] sm:$0xff]
    %v33 = vld [vmem:[%s0] sm:$0xff]
    %v34 = vld [vmem:[%s0 + $0x8] sm:$0x3]
    %v35 = vld [vmem:[#allocation2] sm:$0xff]
    %v36 = vld [vmem:[#allocation2 + $0x8] sm:$0x3]
    %v37 = vld [vmem:[%s2] sm:$0xff]
    %v38 = vld [vmem:[%s2 + $0x8] sm:$0x3]
    %v39 = vmul.f32 %v32, %v32
    %vm40 = vcmask 261120
    %v42 = vsel %vm40, %v35, 0
    %v45 = vsel %vm40, %v36, 0
    %v48 = vsel %vm40, %v32, 0
    %50 = vmatprep.subr.mxu0 0.0
    %51 = vmatpush1.xpose.msra.mxu0 %v48
    %52 = vmatprep.subr.mxu0 0.0
    %53 = vmatpush1.xpose.msra.mxu0 0.0
    %54 = vmatprep.subr.mxu0 0.0
    %55 = vmatpush1.xpose.msra.mxu0 0.0
    %56 = vmatprep.subr.mxu0 0.0
    %57 = vmatpush1.xpose.msra.mxu0 0.0
    %58 = vmatprep.subr.mxu0 0.0
    %59 = vmatpush1.xpose.msra.mxu0 0.0
    %60 = vmatprep.subr.mxu0 0.0
    %61 = vmatpush1.xpose.msra.mxu0 0.0
    %62 = vmatprep.subr.mxu0 0.0
    %63 = vmatpush1.xpose.msra.mxu0 0.0
    %64 = vmatprep.subr.mxu0 0.0
    %65 = vmatpush1.xpose.msra.mxu0 0.0
    %66 = vmatprep.subr.mxu0 0.0
    %67 = vmatpush1.xpose.msra.mxu0 0.0
    %68 = vmatprep.subr.mxu0 0.0
    %69 = vmatpush1.xpose.msra.mxu0 0.0
    %70 = vmatprep.subr.mxu0 0.0
    %71 = vmatpush1.xpose.msra.mxu0 0.0
    %72 = vmatprep.subr.mxu0 0.0
    %73 = vmatpush1.xpose.msra.mxu0 0.0
    %74 = vmatprep.subr.mxu0 0.0
    %75 = vmatpush1.xpose.msra.mxu0 0.0
    %76 = vmatprep.subr.mxu0 0.0
    %77 = vmatpush1.xpose.msra.mxu0 0.0
    %78 = vmatprep.subr.mxu0 0.0
    %79 = vmatpush1.xpose.msra.mxu0 0.0
    %80 = vmatprep.subr.mxu0 0.0
    %81 = vmatpush1.xpose.msra.mxu0 0.0
    %82 = vmatprep.subr.mxu0 0.0
    %83 = vmatpush1.xpose.msra.mxu0 0.0
    %84 = vmatprep.subr.mxu0 0.0
    %85 = vmatpush1.xpose.msra.mxu0 0.0
    %86 = vmatprep.subr.mxu0 0.0
    %87 = vmatpush1.xpose.msra.mxu0 0.0
    %88 = vmatprep.subr.mxu0 0.0
    %89 = vmatpush1.xpose.msra.mxu0 0.0
    %90 = vmatprep.subr.mxu0 0.0
    %91 = vmatpush1.xpose.msra.mxu0 0.0
    %92 = vmatprep.subr.mxu0 0.0
    %93 = vmatpush1.xpose.msra.mxu0 0.0
    %94 = vmatprep.subr.mxu0 0.0
    %95 = vmatpush1.xpose.msra.mxu0 0.0
    %96 = vmatprep.subr.mxu0 0.0
    %97 = vmatpush1.xpose.msra.mxu0 0.0
    %98 = vmatprep.subr.mxu0 0.0
    %99 = vmatpush1.xpose.msra.mxu0 0.0
    %100 = vmatprep.subr.mxu0 0.0
    %101 = vmatpush1.xpose.msra.mxu0 0.0
    %102 = vmatprep.subr.mxu0 0.0
    %103 = vmatpush1.xpose.msra.mxu0 0.0
    %104 = vmatprep.subr.mxu0 0.0
    %105 = vmatpush1.xpose.msra.mxu0 0.0
    %106 = vmatprep.subr.mxu0 0.0
    %107 = vmatpush1.xpose.msra.mxu0 0.0
    %108 = vmatprep.subr.mxu0 0.0
    %109 = vmatpush1.xpose.msra.mxu0 0.0
    %110 = vmatprep.subr.mxu0 0.0
    %111 = vmatpush1.xpose.msra.mxu0 0.0
    %112 = vmatprep.subr.mxu0 0.0
    %113 = vmatpush1.xpose.msra.mxu0 0.0
    %114 = vmatprep.mubr.f32.mxu0 0.0
    %115 = vmatmul.mubr.f32.gmra.mrb[0].mxu0 %v42
    %v116 = vpop.f32.mrb[0].mxu0
    %v117 = vadd.f32 0.0, %v116
    %v118 = vpop.f32.mrb[0].mxu0
    %119 = vmatprep.mubr.f32.mxu0 0.0
    %120 = vmatmul.mubr.f32.gmra.mrb[0].mxu0 %v45
    %v121 = vpop.f32.mrb[0].mxu0
    %v122 = vadd.f32 0.0, %v121
    %v123 = vpop.f32.mrb[0].mxu0
    %124 = vdwg.mxu0
    %v126 = vsel %vm40, %v33, 0
    %v129 = vsel %vm40, %v34, 0
    %v132 = vsel %vm40, %v39, 0
    %134 = vmatprep.subr.mxu0 0.0
    %135 = vmatpush1.xpose.msra.mxu0 %v132
    %136 = vmatprep.subr.mxu0 0.0
    %137 = vmatpush1.xpose.msra.mxu0 0.0
    %138 = vmatprep.subr.mxu0 0.0
    %139 = vmatpush1.xpose.msra.mxu0 0.0
    %140 = vmatprep.subr.mxu0 0.0
    %141 = vmatpush1.xpose.msra.mxu0 0.0
    %142 = vmatprep.subr.mxu0 0.0
    %143 = vmatpush1.xpose.msra.mxu0 0.0
    %144 = vmatprep.subr.mxu0 0.0
    %145 = vmatpush1.xpose.msra.mxu0 0.0
    %146 = vmatprep.subr.mxu0 0.0
    %147 = vmatpush1.xpose.msra.mxu0 0.0
    %148 = vmatprep.subr.mxu0 0.0
    %149 = vmatpush1.xpose.msra.mxu0 0.0
    %150 = vmatprep.subr.mxu0 0.0
    %151 = vmatpush1.xpose.msra.mxu0 0.0
    %152 = vmatprep.subr.mxu0 0.0
    %153 = vmatpush1.xpose.msra.mxu0 0.0
    %154 = vmatprep.subr.mxu0 0.0
    %155 = vmatpush1.xpose.msra.mxu0 0.0
    %156 = vmatprep.subr.mxu0 0.0
    %157 = vmatpush1.xpose.msra.mxu0 0.0
    %158 = vmatprep.subr.mxu0 0.0
    %159 = vmatpush1.xpose.msra.mxu0 0.0
    %160 = vmatprep.subr.mxu0 0.0
    %161 = vmatpush1.xpose.msra.mxu0 0.0
    %162 = vmatprep.subr.mxu0 0.0
    %163 = vmatpush1.xpose.msra.mxu0 0.0
    %164 = vmatprep.subr.mxu0 0.0
    %165 = vmatpush1.xpose.msra.mxu0 0.0
    %166 = vmatprep.subr.mxu0 0.0
    %167 = vmatpush1.xpose.msra.mxu0 0.0
    %168 = vmatprep.subr.mxu0 0.0
    %169 = vmatpush1.xpose.msra.mxu0 0.0
    %170 = vmatprep.subr.mxu0 0.0
    %171 = vmatpush1.xpose.msra.mxu0 0.0
    %172 = vmatprep.subr.mxu0 0.0
    %173 = vmatpush1.xpose.msra.mxu0 0.0
    %174 = vmatprep.subr.mxu0 0.0
    %175 = vmatpush1.xpose.msra.mxu0 0.0
    %176 = vmatprep.subr.mxu0 0.0
    %177 = vmatpush1.xpose.msra.mxu0 0.0
    %178 = vmatprep.subr.mxu0 0.0
    %179 = vmatpush1.xpose.msra.mxu0 0.0
    %180 = vmatprep.subr.mxu0 0.0
    %181 = vmatpush1.xpose.msra.mxu0 0.0
    %182 = vmatprep.subr.mxu0 0.0
    %183 = vmatpush1.xpose.msra.mxu0 0.0
    %184 = vmatprep.subr.mxu0 0.0
    %185 = vmatpush1.xpose.msra.mxu0 0.0
    %186 = vmatprep.subr.mxu0 0.0
    %187 = vmatpush1.xpose.msra.mxu0 0.0
    %188 = vmatprep.subr.mxu0 0.0
    %189 = vmatpush1.xpose.msra.mxu0 0.0
    %190 = vmatprep.subr.mxu0 0.0
    %191 = vmatpush1.xpose.msra.mxu0 0.0
    %192 = vmatprep.subr.mxu0 0.0
    %193 = vmatpush1.xpose.msra.mxu0 0.0
    %194 = vmatprep.subr.mxu0 0.0
    %195 = vmatpush1.xpose.msra.mxu0 0.0
    %196 = vmatprep.subr.mxu0 0.0
    %197 = vmatpush1.xpose.msra.mxu0 0.0
    %198 = vmatprep.mubr.f32.mxu0 0.0
    %199 = vmatmul.mubr.f32.gmra.mrb[0].mxu0 %v126
    %v200 = vpop.f32.mrb[0].mxu0
    %v201 = vadd.f32 %v117, %v200
    %v202 = vpop.f32.mrb[0].mxu0
    %203 = vmatprep.mubr.f32.mxu0 0.0
    %204 = vmatmul.mubr.f32.gmra.mrb[0].mxu0 %v129
    %v205 = vpop.f32.mrb[0].mxu0
    %v206 = vadd.f32 %v122, %v205
    %v207 = vpop.f32.mrb[0].mxu0
    %208 = vdwg.mxu0
    %210 = vset.pattern.permute.xlu0 0
    %211 = vperm.xlu0 %210, %v37
    %v212 = vpop.permute.xlu0 %211
    %215 = vset.pattern.permute.xlu0 0
    %216 = vperm.xlu0 %215, %v38
    %v217 = vpop.permute.xlu0 %216
    %v219 = vadd.f32 %v201, %v212
    %v220 = vadd.f32 %v206, %v217
    %vm221 = vcmask 64512
    %v222 = vsel %vm221, %v219, -inf
    %vm223 = vcmask 58368
    %v224 = vsel %vm223, %v220, -inf
    %v225 = vmax.f32 %v222, %v224
    %v226 = vrot.slane %v225, 4
    %v227 = vmax.f32 %v225, %v226
    %v228 = vrot.slane %v227, 2
    %v229 = vmax.f32 %v227, %v228
    %v230 = vrot.slane %v229, 1
    %v231 = vmax.f32 %v229, %v230
    %v232 = vsub.f32 %v219, %v231
    %v233 = vsub.f32 %v220, %v231
    %v234 = vmul.f32 %v232, 1.442695
    %v235 = vpow.pop %v234
    %v236 = vmul.f32 %v233, 1.442695
    %v237 = vpow.pop %v236
    %v238 = vsel %vm221, %v235, 0.0
    %v239 = vsel %vm223, %v237, 0.0
    %v240 = vadd.f32 %v238, %v239
    %v241 = vrot.slane %v240, 4
    %v242 = vadd.f32 %v240, %v241
    %v243 = vrot.slane %v242, 2
    %v244 = vadd.f32 %v242, %v243
    %v245 = vrot.slane %v244, 1
    %v246 = vadd.f32 %v244, %v245
    %v247 = vlog2.pop %v246
    %v248 = vmul.f32 %v247, 0.6931472
    %v249 = vadd.f32 %v231, %v248
    %vm250 = vcmask 57344
    %251 = vst.msk [vmem:[#allocation5] sm:$0x1] %vm250, %v249
    // Predicated region
    $region22: #{tpu_custom_call.1} parent=1 // pred_check
      _
    $region23: #{tpu_custom_call.1} parent=1 // pred_check_branch
      %253 = sbr.rel (0) target = $region25
    $region24: #{tpu_custom_call.1} parent=1 // pred_region
      %s255 = ssub.s32 16, 16
      %256 = vsyncadd [#allocation4], %s255
      %s258 = sshll.u32 [#allocation5], 4
      %s259 = int_to_ptr.vmem [resolvable:$true] %s258
      %261 = dma.vmem_to_hbm [thread:$0]  %s259, 16, %s4, [#allocation4]
    $region25: #{tpu_custom_call.1} parent=1 // pred_fallthru
      _
    // Predicated region
    $region26: #{tpu_custom_call.1} parent=1 // pred_check
      _
    $region27: #{tpu_custom_call.1} parent=1 // pred_check_branch
      %263 = sbr.rel (0) target = $region29
    $region28: #{tpu_custom_call.1} parent=1 // pred_region
      %264 = dma.done [#allocation4], 16
    $region29: #{tpu_custom_call.1} parent=1 // pred_fallthru
      _
    %265 = vsyncpa [#allocation3], 1
    %266 = vsyncpa [#allocation4], 1

</llo_original>
